<compile_context>
chip_gen: v7x
topology: tpu7x:2x2x1
jax: 0.10.0
libtpu: 0.0.40
codegen_flags: <defaults>
</compile_context>

<pallas_src>
import jax
import jax.numpy as jnp
from jax import lax
from jax.experimental import pallas as pl
from jax.experimental.pallas import tpu as pltpu


def _round_up(x, m):
    return (x + m - 1) // m * m


def _cdiv(a, b):
    return (a + b - 1) // b


# ---------------------------------------------------------------------------
# Kernel 1: im2col GEMM (MXU, K-tiled accumulator) -> per-tile BN statistics.
# The conv output itself never leaves VMEM.
# ---------------------------------------------------------------------------
def _conv_stats_kernel(p_ref, w_ref, s_ref, acc_ref):
    # p_ref : (1, T, TK)      im2col patch rows (one image tile, one K slice)
    # w_ref : (TK, Cp)        weight slice (Cout padded to lane-dense Cp)
    # s_ref : (1, 1, 2, Cp)   per-tile [sum, sum-of-squares] over the T rows
    # acc_ref: (T, Cp) f32    accumulator scratch (persists across k steps)
    k = pl.program_id(2)

    @pl.when(k == 0)
    def _():
        acc_ref[...] = jnp.zeros_like(acc_ref)

    acc_ref[...] += jnp.dot(p_ref[0], w_ref[...],
                            preferred_element_type=jnp.float32)

    @pl.when(k == pl.num_programs(2) - 1)
    def _():
        a = acc_ref[...]
        col_sum = jnp.sum(a, axis=0, keepdims=True)        # (1, Cp)
        col_ssq = jnp.sum(a * a, axis=0, keepdims=True)    # (1, Cp)
        s_ref[...] = jnp.concatenate([col_sum, col_ssq], axis=0)[None, None, :, :]


# ---------------------------------------------------------------------------
# Kernel 2: recompute GEMM, fused BN affine + ReLU, channel-major output.
# ---------------------------------------------------------------------------
def _conv_bn_relu_kernel(p_ref, w_ref, scale_ref, shift_ref, o_ref, acc_ref):
    # o_ref : (1, Cp, T)  transposed (channel-major) output tile
    k = pl.program_id(2)

    @pl.when(k == 0)
    def _():
        acc_ref[...] = jnp.zeros_like(acc_ref)

    acc_ref[...] += jnp.dot(p_ref[0], w_ref[...],
                            preferred_element_type=jnp.float32)

    @pl.when(k == pl.num_programs(2) - 1)
    def _():
        y = acc_ref[...] * scale_ref[...] + shift_ref[...]   # (T, Cp) FMA
        y = jnp.maximum(y, 0.0)
        # XLU transpose (idle unit in this memory-bound epilogue) so the
        # wrapper never needs a full-array XLA transpose to reach NCHW.
        o_ref[...] = jnp.transpose(y, (1, 0))[None, :, :]


def basic_conv(x_nchw, weight_oihw, gamma, beta, *,
               stride=1, padding=0, dilation=1, eps=1e-5,
               use_bf16_gemm=False):
    """BasicConv forward. x: (N, Cin, H, W), weight: (Cout, Cin, KH, KW)."""
    N, Cin, H, W = x_nchw.shape
    Cout, Cin_w, KH, KW = weight_oihw.shape
    assert Cin_w == Cin, "groups != 1 not supported"  # TODO(synk): groups

    Ho = (H + 2 * padding - dilation * (KH - 1) - 1) // stride + 1
    Wo = (W + 2 * padding - dilation * (KW - 1) - 1) // stride + 1
    HW = Ho * Wo

    # ---- im2col in the wrapper; the kernels see one dense GEMM ----
    x = jnp.transpose(x_nchw, (0, 2, 3, 1)).astype(jnp.float32)      # NHWC
    if padding > 0:
        x = jnp.pad(x, ((0, 0), (padding, padding), (padding, padding), (0, 0)))
    cols = []
    for kh in range(KH):
        for kw in range(KW):
            h0, w0 = kh * dilation, kw * dilation
            cols.append(x[:, h0:h0 + (Ho - 1) * stride + 1:stride,
                          w0:w0 + (Wo - 1) * stride + 1:stride, :])
    K = KH * KW * Cin
    patches = jnp.concatenate(cols, axis=-1).reshape(N, HW, K)

    # Lane-dense padding: Cout -> Cp and K -> Kp (multiples of 128).  Zero
    # padding is an exact no-op for both the GEMM and the BN partial sums.
    Cp = _round_up(Cout, 128)
    Kp = _round_up(K, 128)

    # Row tile: multiple of 128 (lane-dense transposed store), per-image so
    # tiles never cross image boundaries; prefer an even parallel-program
    # count so the grid splits evenly across both TensorCores on v7x.
    cands = [t for t in (512, 384, 256, 128) if t <= _round_up(HW, 128)]
    T = max(cands, key=lambda t: ((N * _cdiv(HW, t)) % 2 == 0, t))
    HWp = _round_up(HW, T)
    n_row = HWp // T

    # Contraction tile (innermost "arbitrary" grid axis); keeps VMEM bounded
    # for large Cin*KH*KW.
    if Kp <= 1024:
        TK = Kp
    else:
        TK = 128
        for cand in range(1024, 127, -128):
            if Kp % cand == 0:
                TK = cand
                break
    n_k = Kp // TK

    patches = jnp.pad(patches, ((0, 0), (0, HWp - HW), (0, Kp - K)))
    w = jnp.transpose(weight_oihw, (2, 3, 1, 0)).astype(jnp.float32)
    w = jnp.pad(w.reshape(K, Cout), ((0, Kp - K), (0, Cp - Cout)))

    # TODO(synk): bf16 GEMM inputs (~3x MXU on v6e/v7x, half the patch/weight
    # DMA bytes) loosen the 1e-4 tolerance vs the f32 reference -> off by default.
    gemm_dtype = jnp.bfloat16 if use_bf16_gemm else jnp.float32
    esize = 2 if use_bf16_gemm else 4
    patches = patches.astype(gemm_dtype)
    w = w.astype(gemm_dtype)

    grid = (N, n_row, n_k)
    compiler_params = pltpu.CompilerParams(
        dimension_semantics=("parallel", "parallel", "arbitrary"),
        vmem_limit_bytes=32 * 1024 * 1024,   # safe on v5e/v6e and v7x (64 MiB/TC)
    )

    p_spec = pl.BlockSpec((1, T, TK), lambda n, i, k: (n, i, k))
    # TODO(synk): pipeline_mode=pl.Buffered(1) on the weight spec would halve
    # its VMEM footprint (constant index_map); omitted for lowering safety.
    w_spec = pl.BlockSpec((TK, Cp), lambda n, i, k: (k, 0))

    gemm_flops = 2 * N * HWp * Kp * Cp
    gemm_bytes = esize * (N * HWp * Kp + n_k * Kp * Cp)

    # ---- Pass 1: GEMM -> partial BN stats only (no conv_out in HBM) ----
    stats = pl.pallas_call(
        _conv_stats_kernel,
        out_shape=jax.ShapeDtypeStruct((N, n_row, 2, Cp), jnp.float32),
        grid_spec=pltpu.PrefetchScalarGridSpec(
            num_scalar_prefetch=0,
            grid=grid,
            in_specs=[p_spec, w_spec],
            out_specs=pl.BlockSpec((1, 1, 2, Cp), lambda n, i, k: (n, i, 0, 0)),
            scratch_shapes=[pltpu.VMEM((T, Cp), jnp.float32)]),
        compiler_params=compiler_params,
        cost_estimate=pl.CostEstimate(
            flops=gemm_flops, transcendentals=0,
            bytes_accessed=gemm_bytes + 4 * N * n_row * 2 * Cp),
    )(patches, w)

    # ---- Combine partials (tiny); fold gamma/beta into scale/shift ----
    # TODO(synk): E[x^2]-E[x]^2 in f32 can cancel for large-mean activations;
    # a shifted/Welford combine would be safer for deep configs.
    cnt = N * HW
    s = jnp.sum(stats[:, :, 0, :], axis=(0, 1))             # (Cp,)
    ss = jnp.sum(stats[:, :, 1, :], axis=(0, 1))            # (Cp,)
    mean = s / cnt
    var = jnp.maximum(ss / cnt - mean * mean, 0.0)           # biased batch var
    gamma_p = jnp.pad(gamma.astype(jnp.float32), (0, Cp - Cout),
                      constant_values=1.0)
    beta_p = jnp.pad(beta.astype(jnp.float32), (0, Cp - Cout))
    scale_v = gamma_p * lax.rsqrt(var + eps)
    shift_v = beta_p - mean * scale_v
    scale = scale_v.reshape(1, Cp)
    shift = shift_v.reshape(1, Cp)

    # ---- Pass 2: recompute GEMM + fused BN affine + ReLU, channel-major ----
    out = pl.pallas_call(
        _conv_bn_relu_kernel,
        out_shape=jax.ShapeDtypeStruct((N, Cp, HWp), jnp.float32),
        grid_spec=pltpu.PrefetchScalarGridSpec(
            num_scalar_prefetch=0,
            grid=grid,
            in_specs=[p_spec, w_spec,
                      pl.BlockSpec((1, Cp), lambda n, i, k: (0, 0)),
                      pl.BlockSpec((1, Cp), lambda n, i, k: (0, 0))],
            out_specs=pl.BlockSpec((1, Cp, T), lambda n, i, k: (n, 0, i)),
            scratch_shapes=[pltpu.VMEM((T, Cp), jnp.float32)]),
        compiler_params=compiler_params,
        cost_estimate=pl.CostEstimate(
            flops=gemm_flops + 3 * N * HWp * Cp, transcendentals=0,
            bytes_accessed=gemm_bytes + 4 * (N * HWp * Cp + 2 * Cp)),
    )(patches, w, scale, shift)

    # NCHW via a cheap slice + reshape (no full-array XLA transpose).
    return out[:, :Cout, :HW].reshape(N, Cout, Ho, Wo)


def _reference(x_nchw, weight_oihw, gamma, beta, *, padding=0):
    """Pure-JAX reference: conv + train-mode BN + ReLU."""
    y = lax.conv_general_dilated(
        x_nchw.astype(jnp.float32), weight_oihw.astype(jnp.float32),
        window_strides=(1, 1), padding=[(padding, padding), (padding, padding)],
        dimension_numbers=("NCHW", "OIHW", "NCHW"))
    mean = jnp.mean(y, axis=(0, 2, 3), keepdims=True)
    var = jnp.mean((y - mean) ** 2, axis=(0, 2, 3), keepdims=True)
    y = (y - mean) * lax.rsqrt(var + 1e-5)
    y = y * gamma.reshape(1, -1, 1, 1) + beta.reshape(1, -1, 1, 1)
    return jnp.maximum(y, 0.0)


if __name__ == "__main__":
    # Shapes consistent with BasicConv(in_planes=4, out_planes=8,
    # kernel_size=3, padding=1); x is (N=2, C=4, H=16, W=16).
    key = jax.random.PRNGKey(0)
    k_x, k_w, k_g, k_b = jax.random.split(key, 4)

    in_planes, out_planes, ksize, pad = 4, 8, 3, 1
    x = jax.random.normal(k_x, (2, in_planes, 16, 16), dtype=jnp.float32)
    weight = jax.random.normal(
        k_w, (out_planes, in_planes, ksize, ksize), dtype=jnp.float32) * 0.1
    gamma = 1.0 + 0.1 * jax.random.normal(k_g, (out_planes,), dtype=jnp.float32)
    beta = 0.1 * jax.random.normal(k_b, (out_planes,), dtype=jnp.float32)

    out = basic_conv(x, weight, gamma, beta, padding=pad)
    out = jax.block_until_ready(out)

    ref = _reference(x, weight, gamma, beta, padding=pad)
    assert out.shape == ref.shape == (2, out_planes, 16, 16)
    assert jnp.allclose(out, ref, atol=1e-4, rtol=1e-4)

    print("KERNEL_OK")
</pallas_src>

<mosaic_0001>
module attributes {stable_mosaic.version = 11 : i64} {
  func.func @_conv_stats_kernel(%arg0: i32, %arg1: i32, %arg2: i32, %arg3: memref<1x256x128xf32, #tpu.memory_space<vmem>>, %arg4: memref<128x128xf32, #tpu.memory_space<vmem>>, %arg5: memref<1x1x2x128xf32, #tpu.memory_space<vmem>>, %arg6: memref<256x128xf32, #tpu.memory_space<vmem>>) attributes {dimension_semantics = [#tpu.dimension_semantics<parallel>, #tpu.dimension_semantics<parallel>, #tpu.dimension_semantics<arbitrary>], iteration_bounds = array<i64: 2, 1, 1>, scalar_prefetch = 0 : i64, scratch_operands = 1 : i64, tpu.core_type = #tpu.core_type<tc>, window_params = [{transform_indices = @transform_0, window_bounds = array<i64: 1, 256, 128>}, {transform_indices = @transform_1, window_bounds = array<i64: 128, 128>}, {transform_indices = @transform_2, window_bounds = array<i64: 1, 1, 2, 128>}]} {
    %c0_i32 = arith.constant 0 : i32
    %0 = arith.cmpi eq, %arg2, %c0_i32 : i32
    %1 = arith.extui %0 : i1 to i32
    %c0_i32_0 = arith.constant 0 : i32
    %2 = arith.cmpi ne, %1, %c0_i32_0 : i32
    scf.if %2 {
      %cst_11 = arith.constant 0.000000e+00 : f32
      %13 = vector.broadcast %cst_11 : f32 to vector<256x128xf32>
      %c0_12 = arith.constant 0 : index
      %c0_13 = arith.constant 0 : index
      %14 = vector.load %arg6[%c0_12, %c0_13] : memref<256x128xf32, #tpu.memory_space<vmem>>, vector<256x128xf32>
      tpu.vector_store %arg6[%c0_12, %c0_13], %13 {strides = array<i32>} : memref<256x128xf32, #tpu.memory_space<vmem>>, vector<256x128xf32>,
    } else {
    }
    %c0 = arith.constant 0 : index
    %c0_1 = arith.constant 0 : index
    %3 = vector.load %arg6[%c0, %c0_1] : memref<256x128xf32, #tpu.memory_space<vmem>>, vector<256x128xf32>
    %c0_2 = arith.constant 0 : index
    %c0_3 = arith.constant 0 : index
    %c0_4 = arith.constant 0 : index
    %4 = vector.load %arg3[%c0_2, %c0_3, %c0_4] : memref<1x256x128xf32, #tpu.memory_space<vmem>>, vector<1x256x128xf32>
    %5 = vector.shape_cast %4 : vector<1x256x128xf32> to vector<256x128xf32>
    %c0_5 = arith.constant 0 : index
    %c0_6 = arith.constant 0 : index
    %6 = vector.load %arg4[%c0_5, %c0_6] : memref<128x128xf32, #tpu.memory_space<vmem>>, vector<128x128xf32>
    %cst = arith.constant dense<0.000000e+00> : vector<256x128xf32>
    %7 = tpu.matmul %5, %6, %cst {dimension_numbers = #tpu.dot_dimension_numbers<[1], [0], [0], [1], [0, 0, 1, 1], [], []>} : vector<256x128xf32>, vector<128x128xf32>, vector<256x128xf32> -> vector<256x128xf32>
    %8 = arith.addf %3, %7 : vector<256x128xf32>
    %c0_7 = arith.constant 0 : index
    %c0_8 = arith.constant 0 : index
    %9 = vector.load %arg6[%c0_7, %c0_8] : memref<256x128xf32, #tpu.memory_space<vmem>>, vector<256x128xf32>
    tpu.vector_store %arg6[%c0_7, %c0_8], %8 {strides = array<i32>} : memref<256x128xf32, #tpu.memory_space<vmem>>, vector<256x128xf32>,
    %c0_i32_9 = arith.constant 0 : i32
    %10 = arith.cmpi eq, %arg2, %c0_i32_9 : i32
    %11 = arith.extui %10 : i1 to i32
    %c0_i32_10 = arith.constant 0 : i32
    %12 = arith.cmpi ne, %11, %c0_i32_10 : i32
    scf.if %12 {
      %c0_11 = arith.constant 0 : index
      %c0_12 = arith.constant 0 : index
      %13 = vector.load %arg6[%c0_11, %c0_12] : memref<256x128xf32, #tpu.memory_space<vmem>>, vector<256x128xf32>
      %cst_13 = arith.constant dense<0.000000e+00> : vector<128xf32>
      %14 = vector.multi_reduction <add>, %13, %cst_13 [0] : vector<256x128xf32> to vector<128xf32>
      %15 = vector.shape_cast %14 : vector<128xf32> to vector<1x128xf32>
      %16 = arith.mulf %13, %13 : vector<256x128xf32>
      %cst_14 = arith.constant dense<0.000000e+00> : vector<128xf32>
      %17 = vector.multi_reduction <add>, %16, %cst_14 [0] : vector<256x128xf32> to vector<128xf32>
      %18 = vector.shape_cast %17 : vector<128xf32> to vector<1x128xf32>
      %19 = tpu.concatenate %15, %18 in 0 : vector<1x128xf32>, vector<1x128xf32> -> vector<2x128xf32>
      %20 = vector.shape_cast %19 : vector<2x128xf32> to vector<1x1x2x128xf32>
      %c0_15 = arith.constant 0 : index
      %c0_16 = arith.constant 0 : index
      %c0_17 = arith.constant 0 : index
      %c0_18 = arith.constant 0 : index
      %21 = vector.load %arg5[%c0_15, %c0_16, %c0_17, %c0_18] : memref<1x1x2x128xf32, #tpu.memory_space<vmem>>, vector<1x1x2x128xf32>
      tpu.vector_store %arg5[%c0_15, %c0_16, %c0_17, %c0_18], %20 {strides = array<i32>} : memref<1x1x2x128xf32, #tpu.memory_space<vmem>>, vector<1x1x2x128xf32>,
    } else {
    }
    return
  }
  func.func @transform_0(%arg0: i32, %arg1: i32, %arg2: i32) -> (i32, i32, i32) {
    %c0_i32 = arith.constant 0 : i32
    return %arg0, %arg1, %arg2 : i32, i32, i32
  }
  func.func @transform_1(%arg0: i32, %arg1: i32, %arg2: i32) -> (i32, i32) {
    %c0_i32 = arith.constant 0 : i32
    %c0_i32_0 = arith.constant 0 : i32
    return %arg2, %c0_i32 : i32, i32
  }
  func.func @transform_2(%arg0: i32, %arg1: i32, %arg2: i32) -> (i32, i32, i32, i32) {
    %c0_i32 = arith.constant 0 : i32
    %c0_i32_0 = arith.constant 0 : i32
    %c0_i32_1 = arith.constant 0 : i32
    return %arg0, %arg1, %c0_i32, %c0_i32_0 : i32, i32, i32, i32
  }
}

</mosaic_0001>

<llo_original>
// kernel: tpu_custom_call.1
$region0: #{tpu_custom_call.1}
  #allocation0 [shape = 'u32[]', space=smem, size = 0x4, offset = 0x4, fixed_abs, tag = 'smem constant byte address 0x4 - core index']
  #allocation1 [shape = 'u32[144,128]{1,0:T(1,128)}', space=vmem, size = 0x12000, scoped, tag = 'internal scratch']
  #allocation2 [shape = 'f32[256,128]{1,0:T(8,128)}', space=vmem, size = 0x20000, scoped, tag = 'scratch operand']
  %s0 = inlined_call_operand.hbm [shape: f32[2,256,128], index: 0, kind: input, shape index: {}]
  %s1 = inlined_call_operand.hbm [shape: f32[128,128], index: 1, kind: input, shape index: {}]
  %s2 = inlined_call_operand.hbm [shape: f32[2,1,2,128], index: 2, kind: output, shape index: {}]
  %s3 = sld [smem:[#allocation0]]
  $region57: #{tpu_custom_call.1} parent=0
    _
  %s5 = ssub.s32 1, %s3
  %s6 = scalar_select 0, %s5, %s3
  $region1: #{tpu_custom_call.1} parent=0
    #allocation3 [shape = 'u8[262144]{0}', space=vmem, size = 0x40000, scoped, tag = 'input window, operand 0']
    #allocation4 [shape = 's32[2]{0}', space=sflag, size = 0x8, scoped, tag = 'scoped memory for tpu_custom_call.1']
    #allocation5 [shape = 's32[2]{0}', space=sflag, size = 0x8, scoped, tag = 'scoped memory for tpu_custom_call.1']
    #allocation6 [shape = 'u8[65536]{0}', space=vmem, size = 0x10000, scoped, tag = 'input window, operand 1, single buffered']
    #allocation7 [shape = 's32[1]{0}', space=sflag, size = 0x4, scoped, tag = 'scoped memory for tpu_custom_call.1']
    #allocation8 [shape = 'u8[2048]{0}', space=vmem, size = 0x800, scoped, tag = 'output window, operand 0']
    %7 = vsyncpa [#allocation4], 0
    %s8 = scalar_lea.sflag [#allocation4], 1
    %9 = vsyncpa %s8, 0
    %10 = vsyncpa [#allocation7], 0
    %11 = vsyncpa [#allocation5], 0
    %s12 = scalar_lea.sflag [#allocation5], 1
    %13 = vsyncpa %s12, 0
    loop: start=0, step=1, limit=4
    $region2: #{tpu_custom_call.1} parent=1 // loop_pre_header
      _
    $region3: #{tpu_custom_call.1} parent=1 // loop_header
      %s15 = sphi 0, %s19
      %p16 = scmp.ge.s32.totalorder %s15, 4
      %s22 = sphi 0, %s41
      %s23 = sphi 0, %s37
      %s24 = sphi 0, %s33
      %s25 = sphi 0, %s22
      %s26 = sphi 0, %s23
      %s27 = sphi 0, %s24
      %s28 = sphi 0, %s25
      %s29 = sphi 0, %s26
      %s30 = sphi 0, %s27
      %s48 = sphi 0, %s50
      %s51 = sphi 0, %s48
      %s52 = sphi 0, %s51
      %s68 = sphi 0, %s52
      %s74 = sphi 0, %s76
      %s77 = sphi 0, %s74
      %s78 = sphi 0, %s77
      %s94 = sphi 0, %s78
      %s102 = sphi 0, %s104
      %s105 = sphi 0, %s102
      %s106 = sphi 0, %s105
      %s122 = sphi 0, %s106
    $region4: #{tpu_custom_call.1} parent=1 // loop_header_branch
      %18 = sbr.rel (%p16) target = $region8
    $region5: #{tpu_custom_call.1} parent=1 // loop_body
      %s20 = ssub.s32 %s15, 1
      %s21 = ssub.s32 %s15, 2
      %s31 = sadd.s32 1, %s24
      %p32 = scmp.ge.s32.totalorder %s31, 1
      %s33 = scalar_select %p32, 0, %s31
      %s34 = sadd.s32 1, %s23
      %s35 = scalar_select %p32, %s34, %s23
      %p36 = scmp.ge.s32.totalorder %s35, 1
      %s37 = scalar_select %p36, 0, %s35
      %s38 = sadd.s32 1, %s22
      %s39 = scalar_select %p36, %s38, %s22
      %p40 = scmp.ge.s32.totalorder %s39, 2
      %s41 = scalar_select %p40, 0, %s39
      %s42 = ssub.s32 %s22, %s41
      %s43 = ssub.s32 %s23, %s37
      %s44 = sor.u32 %s42, %s43
      %s45 = ssub.s32 %s24, %s33
      %s46 = sor.u32 %s44, %s45
      %p47 = scmp.eq.s32.totalorder %s46, 0
      %s49 = sadd.s32 %s48, 1
      %s50 = scalar_select %p47, %s48, %s49
      %p53 = pneg %p47
      %p54 = scmp.eq.s32.totalorder %s15, 1
      %p55 = por %p53, %p54
      %p56 = scmp.ne.s32.totalorder %s48, %s51
      %p57 = scmp.eq.s32.totalorder %s15, 0
      %p58 = por %p56, %p57
      %p59 = scmp.ne.s32.totalorder %s48, %s51
      %p60 = scmp.eq.s32.totalorder %s20, 1
      %p61 = por %p59, %p60
      %p62 = scmp.ne.s32.totalorder %s51, %s52
      %p63 = scmp.eq.s32.totalorder %s20, 0
      %p64 = por %p62, %p63
      %p65 = scmp.ne.s32.totalorder %s51, %s52
      %p66 = scmp.eq.s32.totalorder %s21, 1
      %p67 = por %p65, %p66
      %p69 = scmp.ne.s32.totalorder %s52, %s68
      %p70 = scmp.eq.s32.totalorder %s21, 0
      %p71 = por %p69, %p70
      %s72 = ssub.s32 %s24, %s33
      %p73 = scmp.eq.s32.totalorder %s72, 0
      %s75 = sadd.s32 %s74, 1
      %s76 = scalar_select %p73, %s74, %s75
      %p79 = pneg %p73
      %p80 = scmp.eq.s32.totalorder %s15, 1
      %p81 = por %p79, %p80
      %p82 = scmp.ne.s32.totalorder %s74, %s77
      %p83 = scmp.eq.s32.totalorder %s15, 0
      %p84 = por %p82, %p83
      %p85 = scmp.ne.s32.totalorder %s74, %s77
      %p86 = scmp.eq.s32.totalorder %s20, 1
      %p87 = por %p85, %p86
      %p88 = scmp.ne.s32.totalorder %s77, %s78
      %p89 = scmp.eq.s32.totalorder %s20, 0
      %p90 = por %p88, %p89
      %p91 = scmp.ne.s32.totalorder %s77, %s78
      %p92 = scmp.eq.s32.totalorder %s21, 1
      %p93 = por %p91, %p92
      %p95 = scmp.ne.s32.totalorder %s78, %s94
      %p96 = scmp.eq.s32.totalorder %s21, 0
      %p97 = por %p95, %p96
      %s98 = ssub.s32 %s22, %s41
      %s99 = ssub.s32 %s23, %s37
      %s100 = sor.u32 %s98, %s99
      %p101 = scmp.eq.s32.totalorder %s100, 0
      %s103 = sadd.s32 %s102, 1
      %s104 = scalar_select %p101, %s102, %s103
      %p107 = pneg %p101
      %p108 = scmp.eq.s32.totalorder %s15, 1
      %p109 = por %p107, %p108
      %p110 = scmp.ne.s32.totalorder %s102, %s105
      %p111 = scmp.eq.s32.totalorder %s15, 0
      %p112 = por %p110, %p111
      %p113 = scmp.ne.s32.totalorder %s102, %s105
      %p114 = scmp.eq.s32.totalorder %s20, 1
      %p115 = por %p113, %p114
      %p116 = scmp.ne.s32.totalorder %s105, %s106
      %p117 = scmp.eq.s32.totalorder %s20, 0
      %p118 = por %p116, %p117
      %p119 = scmp.ne.s32.totalorder %s105, %s106
      %p120 = scmp.eq.s32.totalorder %s21, 1
      %p121 = por %p119, %p120
      %p123 = scmp.ne.s32.totalorder %s106, %s122
      %p124 = scmp.eq.s32.totalorder %s21, 0
      %p125 = por %p123, %p124
      %p126 = scmp.le.s32.totalorder 1, %s15
      %p127 = scmp.lt.s32.totalorder %s15, 3
      %p128 = pnand %p126, %p127
      %p129 = pneg %p128
      // Predicated region
      $region9: #{tpu_custom_call.1} parent=5 // pred_check
        _
      $region10: #{tpu_custom_call.1} parent=5 // pred_check_branch
        %131 = sbr.rel (%p128) target = $region12
      $region11: #{tpu_custom_call.1} parent=5 // pred_region
        %s132 = ssub.s32 %s15, 1
        // Predicated region
        $region13: #{tpu_custom_call.1} parent=11 // pred_check
          %p133 = pneg %p90
        $region14: #{tpu_custom_call.1} parent=11 // pred_check_branch
          %135 = sbr.rel (%p133) target = $region16
        $region15: #{tpu_custom_call.1} parent=11 // pred_region
          %s136 = smul.u32 16, %s27
          %s138 = ssub.s32 2048, 2048
          %139 = vsyncadd [#allocation7], %s138
          %s140 = smul.addr %s136, 128
          %s141 = scalar_lea.hbm %s1, %s140
          %s142 = sshll.u32 [#allocation6], 4
          %s143 = int_to_ptr.vmem [resolvable:$true] %s142
          %148 = dma.hbm_to_vmem [thread:$0]  %s141, 2048, %s143, [#allocation7], 128, 128, 8
        $region16: #{tpu_custom_call.1} parent=11 // pred_fallthru
          _
      $region12: #{tpu_custom_call.1} parent=5 // pred_fallthru
        _
      %p149 = scmp.lt.s32.totalorder %s15, 2
      // Predicated region
      $region17: #{tpu_custom_call.1} parent=5 // pred_check
        %p150 = pneg %p149
      $region18: #{tpu_custom_call.1} parent=5 // pred_check_branch
        %152 = sbr.rel (%p150) target = $region20
      $region19: #{tpu_custom_call.1} parent=5 // pred_region
        // Predicated region
        $region21: #{tpu_custom_call.1} parent=19 // pred_check
          %p153 = pneg %p58
        $region22: #{tpu_custom_call.1} parent=19 // pred_check_branch
          %155 = sbr.rel (%p153) target = $region24
        $region23: #{tpu_custom_call.1} parent=19 // pred_region
          %s156 = sand.u32 %s48, 1
          %s157 = scalar_lea.sflag [#allocation4], %s156
          %s158 = sand.u32 %s48, 1
          %s159 = smul.addr %s158, 256
          %s160 = scalar_lea.vmem [#allocation3], %s159
          %s161 = smul.u32 32, %s23
          %s163 = ssub.s32 4096, 4096
          %164 = vsyncadd %s157, %s163
          %s165 = sadd.s32 %s24, %s161
          %s166 = smul.addr %s22, 32
          %s167 = sadd.s32 %s165, %s166
          %s168 = smul.addr %s167, 128
          %s169 = scalar_lea.hbm %s0, %s168
          %s170 = sshll.u32 %s160, 4
          %s171 = int_to_ptr.vmem [resolvable:$true] %s170
          %176 = dma.hbm_to_vmem [thread:$0]  %s169, 4096, %s171, %s157, 128, 128, 8
        $region24: #{tpu_custom_call.1} parent=19 // pred_fallthru
          _
      $region20: #{tpu_custom_call.1} parent=5 // pred_fallthru
        _
      %p177 = scmp.le.s32.totalorder 1, %s15
      %p178 = scmp.lt.s32.totalorder %s15, 3
      %p179 = pnand %p177, %p178
      %p180 = pneg %p179
      // Predicated region
      $region25: #{tpu_custom_call.1} parent=5 // pred_check
        _
      $region26: #{tpu_custom_call.1} parent=5 // pred_check_branch
        %182 = sbr.rel (%p179) target = $region28
      $region27: #{tpu_custom_call.1} parent=5 // pred_region
        %s183 = ssub.s32 %s15, 1
        %s184 = sand.u32 %s51, 1
        %s185 = scalar_lea.sflag [#allocation4], %s184
        %s186 = sand.u32 %s51, 1
        %s187 = smul.addr %s186, 256
        %s188 = scalar_lea.vmem [#allocation3], %s187
        // Predicated region
        $region29: #{tpu_custom_call.1} parent=27 // pred_check
          %p189 = pneg %p64
        $region30: #{tpu_custom_call.1} parent=27 // pred_check_branch
          %191 = sbr.rel (%p189) target = $region32
        $region31: #{tpu_custom_call.1} parent=27 // pred_region
          %192 = dma.done %s185, 4096
        $region32: #{tpu_custom_call.1} parent=27 // pred_fallthru
          _
        // Predicated region
        $region33: #{tpu_custom_call.1} parent=27 // pred_check
          %p193 = pneg %p90
        $region34: #{tpu_custom_call.1} parent=27 // pred_check_branch
          %195 = sbr.rel (%p193) target = $region36
        $region35: #{tpu_custom_call.1} parent=27 // pred_region
          %196 = dma.done [#allocation7], 2048
        $region36: #{tpu_custom_call.1} parent=27 // pred_fallthru
          _
        %s197 = sand.u32 %s51, 1
        %s198 = scalar_lea.sflag [#allocation4], %s197
        %s199 = sand.u32 %s51, 1
        %s200 = smul.addr %s199, 256
        %s201 = scalar_lea.vmem [#allocation3], %s200
        %p202 = pneg %p64
        %p203 = pneg %p61
        %p204 = pneg %p90
        %p205 = pneg %p87
        %p206 = pneg %p118
        %p207 = pneg %p115
        %s208 = sand.u32 %s105, 1
        %s209 = scalar_lea.sflag [#allocation5], %s208
        %s210 = sand.u32 %s105, 1
        %s211 = smul.addr %s210, 2
        %s212 = scalar_lea.vmem [#allocation8], %s211
        %s213 = smul.u32 32, %s26
        %s214 = smul.u32 16, %s27
        %p215 = scmp.eq.s32.totalorder %s27, 0
        // Predicated region
        $region37: #{tpu_custom_call.1} parent=27 // pred_check
          %p216 = pneg %p215
        $region38: #{tpu_custom_call.1} parent=27 // pred_check_branch
          %218 = sbr.rel (%p216) target = $region40
        $region39: #{tpu_custom_call.1} parent=27 // pred_region
          %219 = vst [vmem:[#allocation2] sm:$0xff] 0.0
          %220 = vst [vmem:[#allocation2 + $0x8] sm:$0xff] 0.0
          %221 = vst [vmem:[#allocation2 + $0x10] sm:$0xff] 0.0
          %222 = vst [vmem:[#allocation2 + $0x18] sm:$0xff] 0.0
          %223 = vst [vmem:[#allocation2 + $0x20] sm:$0xff] 0.0
          %224 = vst [vmem:[#allocation2 + $0x28] sm:$0xff] 0.0
          %225 = vst [vmem:[#allocation2 + $0x30] sm:$0xff] 0.0
          %226 = vst [vmem:[#allocation2 + $0x38] sm:$0xff] 0.0
          %227 = vst [vmem:[#allocation2 + $0x40] sm:$0xff] 0.0
          %228 = vst [vmem:[#allocation2 + $0x48] sm:$0xff] 0.0
          %229 = vst [vmem:[#allocation2 + $0x50] sm:$0xff] 0.0
          %230 = vst [vmem:[#allocation2 + $0x58] sm:$0xff] 0.0
          %231 = vst [vmem:[#allocation2 + $0x60] sm:$0xff] 0.0
          %232 = vst [vmem:[#allocation2 + $0x68] sm:$0xff] 0.0
          %233 = vst [vmem:[#allocation2 + $0x70] sm:$0xff] 0.0
          %234 = vst [vmem:[#allocation2 + $0x78] sm:$0xff] 0.0
          %235 = vst [vmem:[#allocation2 + $0x80] sm:$0xff] 0.0
          %236 = vst [vmem:[#allocation2 + $0x88] sm:$0xff] 0.0
          %237 = vst [vmem:[#allocation2 + $0x90] sm:$0xff] 0.0
          %238 = vst [vmem:[#allocation2 + $0x98] sm:$0xff] 0.0
          %239 = vst [vmem:[#allocation2 + $0xa0] sm:$0xff] 0.0
          %240 = vst [vmem:[#allocation2 + $0xa8] sm:$0xff] 0.0
          %241 = vst [vmem:[#allocation2 + $0xb0] sm:$0xff] 0.0
          %242 = vst [vmem:[#allocation2 + $0xb8] sm:$0xff] 0.0
          %243 = vst [vmem:[#allocation2 + $0xc0] sm:$0xff] 0.0
          %244 = vst [vmem:[#allocation2 + $0xc8] sm:$0xff] 0.0
          %245 = vst [vmem:[#allocation2 + $0xd0] sm:$0xff] 0.0
          %246 = vst [vmem:[#allocation2 + $0xd8] sm:$0xff] 0.0
          %247 = vst [vmem:[#allocation2 + $0xe0] sm:$0xff] 0.0
          %248 = vst [vmem:[#allocation2 + $0xe8] sm:$0xff] 0.0
          %249 = vst [vmem:[#allocation2 + $0xf0] sm:$0xff] 0.0
          %250 = vst [vmem:[#allocation2 + $0xf8] sm:$0xff] 0.0
        $region40: #{tpu_custom_call.1} parent=27 // pred_fallthru
          _
        %v251 = vld [vmem:[#allocation2] sm:$0xff]
        %v252 = vld [vmem:[#allocation2 + $0x8] sm:$0xff]
        %v253 = vld [vmem:[#allocation2 + $0x10] sm:$0xff]
        %v254 = vld [vmem:[#allocation2 + $0x18] sm:$0xff]
        %v255 = vld [vmem:[#allocation2 + $0x20] sm:$0xff]
        %v256 = vld [vmem:[#allocation2 + $0x28] sm:$0xff]
        %v257 = vld [vmem:[#allocation2 + $0x30] sm:$0xff]
        %v258 = vld [vmem:[#allocation2 + $0x38] sm:$0xff]
        %v259 = vld [vmem:[#allocation2 + $0x40] sm:$0xff]
        %v260 = vld [vmem:[#allocation2 + $0x48] sm:$0xff]
        %v261 = vld [vmem:[#allocation2 + $0x50] sm:$0xff]
        %v262 = vld [vmem:[#allocation2 + $0x58] sm:$0xff]
        %v263 = vld [vmem:[#allocation2 + $0x60] sm:$0xff]
        %v264 = vld [vmem:[#allocation2 + $0x68] sm:$0xff]
        %v265 = vld [vmem:[#allocation2 + $0x70] sm:$0xff]
        %v266 = vld [vmem:[#allocation2 + $0x78] sm:$0xff]
        %v267 = vld [vmem:[#allocation2 + $0x80] sm:$0xff]
        %v268 = vld [vmem:[#allocation2 + $0x88] sm:$0xff]
        %v269 = vld [vmem:[#allocation2 + $0x90] sm:$0xff]
        %v270 = vld [vmem:[#allocation2 + $0x98] sm:$0xff]
        %v271 = vld [vmem:[#allocation2 + $0xa0] sm:$0xff]
        %v272 = vld [vmem:[#allocation2 + $0xa8] sm:$0xff]
        %v273 = vld [vmem:[#allocation2 + $0xb0] sm:$0xff]
        %v274 = vld [vmem:[#allocation2 + $0xb8] sm:$0xff]
        %v275 = vld [vmem:[#allocation2 + $0xc0] sm:$0xff]
        %v276 = vld [vmem:[#allocation2 + $0xc8] sm:$0xff]
        %v277 = vld [vmem:[#allocation2 + $0xd0] sm:$0xff]
        %v278 = vld [vmem:[#allocation2 + $0xd8] sm:$0xff]
        %v279 = vld [vmem:[#allocation2 + $0xe0] sm:$0xff]
        %v280 = vld [vmem:[#allocation2 + $0xe8] sm:$0xff]
        %v281 = vld [vmem:[#allocation2 + $0xf0] sm:$0xff]
        %v282 = vld [vmem:[#allocation2 + $0xf8] sm:$0xff]
        %v283 = vld [vmem:[%s188] sm:$0xff]
        %v284 = vld [vmem:[%s188 + $0x8] sm:$0xff]
        %v285 = vld [vmem:[%s188 + $0x10] sm:$0xff]
        %v286 = vld [vmem:[%s188 + $0x18] sm:$0xff]
        %v287 = vld [vmem:[%s188 + $0x20] sm:$0xff]
        %v288 = vld [vmem:[%s188 + $0x28] sm:$0xff]
        %v289 = vld [vmem:[%s188 + $0x30] sm:$0xff]
        %v290 = vld [vmem:[%s188 + $0x38] sm:$0xff]
        %v291 = vld [vmem:[%s188 + $0x40] sm:$0xff]
        %v292 = vld [vmem:[%s188 + $0x48] sm:$0xff]
        %v293 = vld [vmem:[%s188 + $0x50] sm:$0xff]
        %v294 = vld [vmem:[%s188 + $0x58] sm:$0xff]
        %v295 = vld [vmem:[%s188 + $0x60] sm:$0xff]
        %v296 = vld [vmem:[%s188 + $0x68] sm:$0xff]
        %v297 = vld [vmem:[%s188 + $0x70] sm:$0xff]
        %v298 = vld [vmem:[%s188 + $0x78] sm:$0xff]
        %v299 = vld [vmem:[%s188 + $0x80] sm:$0xff]
        %v300 = vld [vmem:[%s188 + $0x88] sm:$0xff]
        %v301 = vld [vmem:[%s188 + $0x90] sm:$0xff]
        %v302 = vld [vmem:[%s188 + $0x98] sm:$0xff]
        %v303 = vld [vmem:[%s188 + $0xa0] sm:$0xff]
        %v304 = vld [vmem:[%s188 + $0xa8] sm:$0xff]
        %v305 = vld [vmem:[%s188 + $0xb0] sm:$0xff]
        %v306 = vld [vmem:[%s188 + $0xb8] sm:$0xff]
        %v307 = vld [vmem:[%s188 + $0xc0] sm:$0xff]
        %v308 = vld [vmem:[%s188 + $0xc8] sm:$0xff]
        %v309 = vld [vmem:[%s188 + $0xd0] sm:$0xff]
        %v310 = vld [vmem:[%s188 + $0xd8] sm:$0xff]
        %v311 = vld [vmem:[%s188 + $0xe0] sm:$0xff]
        %v312 = vld [vmem:[%s188 + $0xe8] sm:$0xff]
        %v313 = vld [vmem:[%s188 + $0xf0] sm:$0xff]
        %v314 = vld [vmem:[%s188 + $0xf8] sm:$0xff]
        %v315 = vld [vmem:[#allocation6] sm:$0xff]
        %v316 = vld [vmem:[#allocation6 + $0x8] sm:$0xff]
        %v317 = vld [vmem:[#allocation6 + $0x10] sm:$0xff]
        %v318 = vld [vmem:[#allocation6 + $0x18] sm:$0xff]
        %v319 = vld [vmem:[#allocation6 + $0x20] sm:$0xff]
        %v320 = vld [vmem:[#allocation6 + $0x28] sm:$0xff]
        %v321 = vld [vmem:[#allocation6 + $0x30] sm:$0xff]
        %v322 = vld [vmem:[#allocation6 + $0x38] sm:$0xff]
        %v323 = vld [vmem:[#allocation6 + $0x40] sm:$0xff]
        %v324 = vld [vmem:[#allocation6 + $0x48] sm:$0xff]
        %v325 = vld [vmem:[#allocation6 + $0x50] sm:$0xff]
        %v326 = vld [vmem:[#allocation6 + $0x58] sm:$0xff]
        %v327 = vld [vmem:[#allocation6 + $0x60] sm:$0xff]
        %v328 = vld [vmem:[#allocation6 + $0x68] sm:$0xff]
        %v329 = vld [vmem:[#allocation6 + $0x70] sm:$0xff]
        %v330 = vld [vmem:[#allocation6 + $0x78] sm:$0xff]
        %331 = vmatprep.subr.mxu0 0.0
        %332 = vmatpush1.msra.mxu0 %v315
        %333 = vmatprep.subr.mxu0 0.0
        %334 = vmatpush1.msra.mxu0 %v316
        %335 = vmatprep.subr.mxu0 0.0
        %336 = vmatpush1.msra.mxu0 %v317
        %337 = vmatprep.subr.mxu0 0.0
        %338 = vmatpush1.msra.mxu0 %v318
        %339 = vmatprep.subr.mxu0 0.0
        %340 = vmatpush1.msra.mxu0 %v319
        %341 = vmatprep.subr.mxu0 0.0
        %342 = vmatpush1.msra.mxu0 %v320
        %343 = vmatprep.subr.mxu0 0.0
        %344 = vmatpush1.msra.mxu0 %v321
        %345 = vmatprep.subr.mxu0 0.0
        %346 = vmatpush1.msra.mxu0 %v322
        %347 = vmatprep.subr.mxu0 0.0
        %348 = vmatpush1.msra.mxu0 %v323
        %349 = vmatprep.subr.mxu0 0.0
        %350 = vmatpush1.msra.mxu0 %v324
        %351 = vmatprep.subr.mxu0 0.0
        %352 = vmatpush1.msra.mxu0 %v325
        %353 = vmatprep.subr.mxu0 0.0
        %354 = vmatpush1.msra.mxu0 %v326
        %355 = vmatprep.subr.mxu0 0.0
        %356 = vmatpush1.msra.mxu0 %v327
        %357 = vmatprep.subr.mxu0 0.0
        %358 = vmatpush1.msra.mxu0 %v328
        %359 = vmatprep.subr.mxu0 0.0
        %360 = vmatpush1.msra.mxu0 %v329
        %361 = vmatprep.subr.mxu0 0.0
        %362 = vmatpush1.msra.mxu0 %v330
        %363 = vmatprep.subr.mxu0 0.0
        %364 = vmatpush1.msra.mxu0 0.0
        %365 = vmatprep.subr.mxu0 0.0
        %366 = vmatpush1.msra.mxu0 0.0
        %367 = vmatprep.subr.mxu0 0.0
        %368 = vmatpush1.msra.mxu0 0.0
        %369 = vmatprep.subr.mxu0 0.0
        %370 = vmatpush1.msra.mxu0 0.0
        %371 = vmatprep.subr.mxu0 0.0
        %372 = vmatpush1.msra.mxu0 0.0
        %373 = vmatprep.subr.mxu0 0.0
        %374 = vmatpush1.msra.mxu0 0.0
        %375 = vmatprep.subr.mxu0 0.0
        %376 = vmatpush1.msra.mxu0 0.0
        %377 = vmatprep.subr.mxu0 0.0
        %378 = vmatpush1.msra.mxu0 0.0
        %379 = vmatprep.subr.mxu0 0.0
        %380 = vmatpush1.msra.mxu0 0.0
        %381 = vmatprep.subr.mxu0 0.0
        %382 = vmatpush1.msra.mxu0 0.0
        %383 = vmatprep.subr.mxu0 0.0
        %384 = vmatpush1.msra.mxu0 0.0
        %385 = vmatprep.subr.mxu0 0.0
        %386 = vmatpush1.msra.mxu0 0.0
        %387 = vmatprep.subr.mxu0 0.0
        %388 = vmatpush1.msra.mxu0 0.0
        %389 = vmatprep.subr.mxu0 0.0
        %390 = vmatpush1.msra.mxu0 0.0
        %391 = vmatprep.subr.mxu0 0.0
        %392 = vmatpush1.msra.mxu0 0.0
        %393 = vmatprep.subr.mxu0 0.0
        %394 = vmatpush1.msra.mxu0 0.0
        %395 = vmatprep.mubr.f32.mxu0 0.0
        %396 = vmatmul.mubr.f32.gmra.mrb[0].mxu0 %v283
        %v397 = vpop.f32.mrb[0].mxu0
        %v398 = vadd.f32 0.0, %v397
        %v399 = vpop.f32.mrb[0].mxu0
        %400 = vmatprep.mubr.f32.mxu0 0.0
        %401 = vmatmul.mubr.f32.gmra.mrb[0].mxu0 %v284
        %v402 = vpop.f32.mrb[0].mxu0
        %v403 = vadd.f32 0.0, %v402
        %v404 = vpop.f32.mrb[0].mxu0
        %405 = vmatprep.mubr.f32.mxu0 0.0
        %406 = vmatmul.mubr.f32.gmra.mrb[0].mxu0 %v285
        %v407 = vpop.f32.mrb[0].mxu0
        %v408 = vadd.f32 0.0, %v407
        %v409 = vpop.f32.mrb[0].mxu0
        %410 = vmatprep.mubr.f32.mxu0 0.0
        %411 = vmatmul.mubr.f32.gmra.mrb[0].mxu0 %v286
        %v412 = vpop.f32.mrb[0].mxu0
        %v413 = vadd.f32 0.0, %v412
        %v414 = vpop.f32.mrb[0].mxu0
        %415 = vmatprep.mubr.f32.mxu0 0.0
        %416 = vmatmul.mubr.f32.gmra.mrb[0].mxu0 %v287
        %v417 = vpop.f32.mrb[0].mxu0
        %v418 = vadd.f32 0.0, %v417
        %v419 = vpop.f32.mrb[0].mxu0
        %420 = vmatprep.mubr.f32.mxu0 0.0
        %421 = vmatmul.mubr.f32.gmra.mrb[0].mxu0 %v288
        %v422 = vpop.f32.mrb[0].mxu0
        %v423 = vadd.f32 0.0, %v422
        %v424 = vpop.f32.mrb[0].mxu0
        %425 = vmatprep.mubr.f32.mxu0 0.0
        %426 = vmatmul.mubr.f32.gmra.mrb[0].mxu0 %v289
        %v427 = vpop.f32.mrb[0].mxu0
        %v428 = vadd.f32 0.0, %v427
        %v429 = vpop.f32.mrb[0].mxu0
        %430 = vmatprep.mubr.f32.mxu0 0.0
        %431 = vmatmul.mubr.f32.gmra.mrb[0].mxu0 %v290
        %v432 = vpop.f32.mrb[0].mxu0
        %v433 = vadd.f32 0.0, %v432
        %v434 = vpop.f32.mrb[0].mxu0
        %435 = vmatprep.mubr.f32.mxu0 0.0
        %436 = vmatmul.mubr.f32.gmra.mrb[0].mxu0 %v291
        %v437 = vpop.f32.mrb[0].mxu0
        %v438 = vadd.f32 0.0, %v437
        %v439 = vpop.f32.mrb[0].mxu0
        %440 = vmatprep.mubr.f32.mxu0 0.0
        %441 = vmatmul.mubr.f32.gmra.mrb[0].mxu0 %v292
        %v442 = vpop.f32.mrb[0].mxu0
        %v443 = vadd.f32 0.0, %v442
        %v444 = vpop.f32.mrb[0].mxu0
        %445 = vmatprep.mubr.f32.mxu0 0.0
        %446 = vmatmul.mubr.f32.gmra.mrb[0].mxu0 %v293
        %v447 = vpop.f32.mrb[0].mxu0
        %v448 = vadd.f32 0.0, %v447
        %v449 = vpop.f32.mrb[0].mxu0
        %450 = vmatprep.mubr.f32.mxu0 0.0
        %451 = vmatmul.mubr.f32.gmra.mrb[0].mxu0 %v294
        %v452 = vpop.f32.mrb[0].mxu0
        %v453 = vadd.f32 0.0, %v452
        %v454 = vpop.f32.mrb[0].mxu0
        %455 = vmatprep.mubr.f32.mxu0 0.0
        %456 = vmatmul.mubr.f32.gmra.mrb[0].mxu0 %v295
        %v457 = vpop.f32.mrb[0].mxu0
        %v458 = vadd.f32 0.0, %v457
        %v459 = vpop.f32.mrb[0].mxu0
        %460 = vmatprep.mubr.f32.mxu0 0.0
        %461 = vmatmul.mubr.f32.gmra.mrb[0].mxu0 %v296
        %v462 = vpop.f32.mrb[0].mxu0
        %v463 = vadd.f32 0.0, %v462
        %v464 = vpop.f32.mrb[0].mxu0
        %465 = vmatprep.mubr.f32.mxu0 0.0
        %466 = vmatmul.mubr.f32.gmra.mrb[0].mxu0 %v297
        %v467 = vpop.f32.mrb[0].mxu0
        %v468 = vadd.f32 0.0, %v467
        %v469 = vpop.f32.mrb[0].mxu0
        %470 = vmatprep.mubr.f32.mxu0 0.0
        %471 = vmatmul.mubr.f32.gmra.mrb[0].mxu0 %v298
        %v472 = vpop.f32.mrb[0].mxu0
        %v473 = vadd.f32 0.0, %v472
        %v474 = vpop.f32.mrb[0].mxu0
        %475 = vmatprep.mubr.f32.mxu0 0.0
        %476 = vmatmul.mubr.f32.gmra.mrb[0].mxu0 %v299
        %v477 = vpop.f32.mrb[0].mxu0
        %v478 = vadd.f32 0.0, %v477
        %v479 = vpop.f32.mrb[0].mxu0
        %480 = vmatprep.mubr.f32.mxu0 0.0
        %481 = vmatmul.mubr.f32.gmra.mrb[0].mxu0 %v300
        %v482 = vpop.f32.mrb[0].mxu0
        %v483 = vadd.f32 0.0, %v482
        %v484 = vpop.f32.mrb[0].mxu0
        %485 = vmatprep.mubr.f32.mxu0 0.0
        %486 = vmatmul.mubr.f32.gmra.mrb[0].mxu0 %v301
        %v487 = vpop.f32.mrb[0].mxu0
        %v488 = vadd.f32 0.0, %v487
        %v489 = vpop.f32.mrb[0].mxu0
        %490 = vmatprep.mubr.f32.mxu0 0.0
        %491 = vmatmul.mubr.f32.gmra.mrb[0].mxu0 %v302
        %v492 = vpop.f32.mrb[0].mxu0
        %v493 = vadd.f32 0.0, %v492
        %v494 = vpop.f32.mrb[0].mxu0
        %495 = vmatprep.mubr.f32.mxu0 0.0
        %496 = vmatmul.mubr.f32.gmra.mrb[0].mxu0 %v303
        %v497 = vpop.f32.mrb[0].mxu0
        %v498 = vadd.f32 0.0, %v497
        %v499 = vpop.f32.mrb[0].mxu0
        %500 = vmatprep.mubr.f32.mxu0 0.0
        %501 = vmatmul.mubr.f32.gmra.mrb[0].mxu0 %v304
        %v502 = vpop.f32.mrb[0].mxu0
        %v503 = vadd.f32 0.0, %v502
        %v504 = vpop.f32.mrb[0].mxu0
        %505 = vmatprep.mubr.f32.mxu0 0.0
        %506 = vmatmul.mubr.f32.gmra.mrb[0].mxu0 %v305
        %v507 = vpop.f32.mrb[0].mxu0
        %v508 = vadd.f32 0.0, %v507
        %v509 = vpop.f32.mrb[0].mxu0
        %510 = vmatprep.mubr.f32.mxu0 0.0
        %511 = vmatmul.mubr.f32.gmra.mrb[0].mxu0 %v306
        %v512 = vpop.f32.mrb[0].mxu0
        %v513 = vadd.f32 0.0, %v512
        %v514 = vpop.f32.mrb[0].mxu0
        %515 = vmatprep.mubr.f32.mxu0 0.0
        %516 = vmatmul.mubr.f32.gmra.mrb[0].mxu0 %v307
        %v517 = vpop.f32.mrb[0].mxu0
        %v518 = vadd.f32 0.0, %v517
        %v519 = vpop.f32.mrb[0].mxu0
        %520 = vmatprep.mubr.f32.mxu0 0.0
        %521 = vmatmul.mubr.f32.gmra.mrb[0].mxu0 %v308
        %v522 = vpop.f32.mrb[0].mxu0
        %v523 = vadd.f32 0.0, %v522
        %v524 = vpop.f32.mrb[0].mxu0
        %525 = vmatprep.mubr.f32.mxu0 0.0
        %526 = vmatmul.mubr.f32.gmra.mrb[0].mxu0 %v309
        %v527 = vpop.f32.mrb[0].mxu0
        %v528 = vadd.f32 0.0, %v527
        %v529 = vpop.f32.mrb[0].mxu0
        %530 = vmatprep.mubr.f32.mxu0 0.0
        %531 = vmatmul.mubr.f32.gmra.mrb[0].mxu0 %v310
        %v532 = vpop.f32.mrb[0].mxu0
        %v533 = vadd.f32 0.0, %v532
        %v534 = vpop.f32.mrb[0].mxu0
        %535 = vmatprep.mubr.f32.mxu0 0.0
        %536 = vmatmul.mubr.f32.gmra.mrb[0].mxu0 %v311
        %v537 = vpop.f32.mrb[0].mxu0
        %v538 = vadd.f32 0.0, %v537
        %v539 = vpop.f32.mrb[0].mxu0
        %540 = vmatprep.mubr.f32.mxu0 0.0
        %541 = vmatmul.mubr.f32.gmra.mrb[0].mxu0 %v312
        %v542 = vpop.f32.mrb[0].mxu0
        %v543 = vadd.f32 0.0, %v542
        %v544 = vpop.f32.mrb[0].mxu0
        %545 = vmatprep.mubr.f32.mxu0 0.0
        %546 = vmatmul.mubr.f32.gmra.mrb[0].mxu0 %v313
        %v547 = vpop.f32.mrb[0].mxu0
        %v548 = vadd.f32 0.0, %v547
        %v549 = vpop.f32.mrb[0].mxu0
        %550 = vmatprep.mubr.f32.mxu0 0.0
        %551 = vmatmul.mubr.f32.gmra.mrb[0].mxu0 %v314
        %v552 = vpop.f32.mrb[0].mxu0
        %v553 = vadd.f32 0.0, %v552
        %v554 = vpop.f32.mrb[0].mxu0
        %555 = vdwg.mxu0
        %v556 = vadd.f32 %v251, %v398
        %v557 = vadd.f32 %v252, %v403
        %v558 = vadd.f32 %v253, %v408
        %v559 = vadd.f32 %v254, %v413
        %v560 = vadd.f32 %v255, %v418
        %v561 = vadd.f32 %v256, %v423
        %v562 = vadd.f32 %v257, %v428
        %v563 = vadd.f32 %v258, %v433
        %v564 = vadd.f32 %v259, %v438
        %v565 = vadd.f32 %v260, %v443
        %v566 = vadd.f32 %v261, %v448
        %v567 = vadd.f32 %v262, %v453
        %v568 = vadd.f32 %v263, %v458
        %v569 = vadd.f32 %v264, %v463
        %v570 = vadd.f32 %v265, %v468
        %v571 = vadd.f32 %v266, %v473
        %v572 = vadd.f32 %v267, %v478
        %v573 = vadd.f32 %v268, %v483
        %v574 = vadd.f32 %v269, %v488
        %v575 = vadd.f32 %v270, %v493
        %v576 = vadd.f32 %v271, %v498
        %v577 = vadd.f32 %v272, %v503
        %v578 = vadd.f32 %v273, %v508
        %v579 = vadd.f32 %v274, %v513
        %v580 = vadd.f32 %v275, %v518
        %v581 = vadd.f32 %v276, %v523
        %v582 = vadd.f32 %v277, %v528
        %v583 = vadd.f32 %v278, %v533
        %v584 = vadd.f32 %v279, %v538
        %v585 = vadd.f32 %v280, %v543
        %v586 = vadd.f32 %v281, %v548
        %v587 = vadd.f32 %v282, %v553
        %588 = vst [vmem:[#allocation2] sm:$0xff] %v556
        %589 = vst [vmem:[#allocation2 + $0x8] sm:$0xff] %v557
        %590 = vst [vmem:[#allocation2 + $0x10] sm:$0xff] %v558
        %591 = vst [vmem:[#allocation2 + $0x18] sm:$0xff] %v559
        %592 = vst [vmem:[#allocation2 + $0x20] sm:$0xff] %v560
        %593 = vst [vmem:[#allocation2 + $0x28] sm:$0xff] %v561
        %594 = vst [vmem:[#allocation2 + $0x30] sm:$0xff] %v562
        %595 = vst [vmem:[#allocation2 + $0x38] sm:$0xff] %v563
        %596 = vst [vmem:[#allocation2 + $0x40] sm:$0xff] %v564
        %597 = vst [vmem:[#allocation2 + $0x48] sm:$0xff] %v565
        %598 = vst [vmem:[#allocation2 + $0x50] sm:$0xff] %v566
        %599 = vst [vmem:[#allocation2 + $0x58] sm:$0xff] %v567
        %600 = vst [vmem:[#allocation2 + $0x60] sm:$0xff] %v568
        %601 = vst [vmem:[#allocation2 + $0x68] sm:$0xff] %v569
        %602 = vst [vmem:[#allocation2 + $0x70] sm:$0xff] %v570
        %603 = vst [vmem:[#allocation2 + $0x78] sm:$0xff] %v571
        %604 = vst [vmem:[#allocation2 + $0x80] sm:$0xff] %v572
        %605 = vst [vmem:[#allocation2 + $0x88] sm:$0xff] %v573
        %606 = vst [vmem:[#allocation2 + $0x90] sm:$0xff] %v574
        %607 = vst [vmem:[#allocation2 + $0x98] sm:$0xff] %v575
        %608 = vst [vmem:[#allocation2 + $0xa0] sm:$0xff] %v576
        %609 = vst [vmem:[#allocation2 + $0xa8] sm:$0xff] %v577
        %610 = vst [vmem:[#allocation2 + $0xb0] sm:$0xff] %v578
        %611 = vst [vmem:[#allocation2 + $0xb8] sm:$0xff] %v579
        %612 = vst [vmem:[#allocation2 + $0xc0] sm:$0xff] %v580
        %613 = vst [vmem:[#allocation2 + $0xc8] sm:$0xff] %v581
        %614 = vst [vmem:[#allocation2 + $0xd0] sm:$0xff] %v582
        %615 = vst [vmem:[#allocation2 + $0xd8] sm:$0xff] %v583
        %616 = vst [vmem:[#allocation2 + $0xe0] sm:$0xff] %v584
        %617 = vst [vmem:[#allocation2 + $0xe8] sm:$0xff] %v585
        %618 = vst [vmem:[#allocation2 + $0xf0] sm:$0xff] %v586
        %619 = vst [vmem:[#allocation2 + $0xf8] sm:$0xff] %v587
        // Predicated region
        $region41: #{tpu_custom_call.1} parent=27 // pred_check
          %p620 = pneg %p215
        $region42: #{tpu_custom_call.1} parent=27 // pred_check_branch
          %622 = sbr.rel (%p620) target = $region44
        $region43: #{tpu_custom_call.1} parent=27 // pred_region
          %v623 = vld [vmem:[#allocation2] sm:$0xff]
          %v624 = vld [vmem:[#allocation2 + $0x8] sm:$0xff]
          %v625 = vld [vmem:[#allocation2 + $0x10] sm:$0xff]
          %v626 = vld [vmem:[#allocation2 + $0x18] sm:$0xff]
          %v627 = vld [vmem:[#allocation2 + $0x20] sm:$0xff]
          %v628 = vld [vmem:[#allocation2 + $0x28] sm:$0xff]
          %v629 = vld [vmem:[#allocation2 + $0x30] sm:$0xff]
          %v630 = vld [vmem:[#allocation2 + $0x38] sm:$0xff]
          %v631 = vld [vmem:[#allocation2 + $0x40] sm:$0xff]
          %v632 = vld [vmem:[#allocation2 + $0x48] sm:$0xff]
          %v633 = vld [vmem:[#allocation2 + $0x50] sm:$0xff]
          %v634 = vld [vmem:[#allocation2 + $0x58] sm:$0xff]
          %v635 = vld [vmem:[#allocation2 + $0x60] sm:$0xff]
          %v636 = vld [vmem:[#allocation2 + $0x68] sm:$0xff]
          %v637 = vld [vmem:[#allocation2 + $0x70] sm:$0xff]
          %v638 = vld [vmem:[#allocation2 + $0x78] sm:$0xff]
          %v639 = vld [vmem:[#allocation2 + $0x80] sm:$0xff]
          %v640 = vld [vmem:[#allocation2 + $0x88] sm:$0xff]
          %v641 = vld [vmem:[#allocation2 + $0x90] sm:$0xff]
          %v642 = vld [vmem:[#allocation2 + $0x98] sm:$0xff]
          %v643 = vld [vmem:[#allocation2 + $0xa0] sm:$0xff]
          %v644 = vld [vmem:[#allocation2 + $0xa8] sm:$0xff]
          %v645 = vld [vmem:[#allocation2 + $0xb0] sm:$0xff]
          %v646 = vld [vmem:[#allocation2 + $0xb8] sm:$0xff]
          %v647 = vld [vmem:[#allocation2 + $0xc0] sm:$0xff]
          %v648 = vld [vmem:[#allocation2 + $0xc8] sm:$0xff]
          %v649 = vld [vmem:[#allocation2 + $0xd0] sm:$0xff]
          %v650 = vld [vmem:[#allocation2 + $0xd8] sm:$0xff]
          %v651 = vld [vmem:[#allocation2 + $0xe0] sm:$0xff]
          %v652 = vld [vmem:[#allocation2 + $0xe8] sm:$0xff]
          %v653 = vld [vmem:[#allocation2 + $0xf0] sm:$0xff]
          %v654 = vld [vmem:[#allocation2 + $0xf8] sm:$0xff]
          %v655 = vadd.f32 %v623, %v624
          %v656 = vadd.f32 %v655, %v625
          %v657 = vadd.f32 %v656, %v626
          %v658 = vadd.f32 %v657, %v627
          %v659 = vadd.f32 %v658, %v628
          %v660 = vadd.f32 %v659, %v629
          %v661 = vadd.f32 %v660, %v630
          %v662 = vadd.f32 %v661, %v631
          %v663 = vadd.f32 %v662, %v632
          %v664 = vadd.f32 %v663, %v633
          %v665 = vadd.f32 %v664, %v634
          %v666 = vadd.f32 %v665, %v635
          %v667 = vadd.f32 %v666, %v636
          %v668 = vadd.f32 %v667, %v637
          %v669 = vadd.f32 %v668, %v638
          %v670 = vadd.f32 %v669, %v639
          %v671 = vadd.f32 %v670, %v640
          %v672 = vadd.f32 %v671, %v641
          %v673 = vadd.f32 %v672, %v642
          %v674 = vadd.f32 %v673, %v643
          %v675 = vadd.f32 %v674, %v644
          %v676 = vadd.f32 %v675, %v645
          %v677 = vadd.f32 %v676, %v646
          %v678 = vadd.f32 %v677, %v647
          %v679 = vadd.f32 %v678, %v648
          %v680 = vadd.f32 %v679, %v649
          %v681 = vadd.f32 %v680, %v650
          %v682 = vadd.f32 %v681, %v651
          %v683 = vadd.f32 %v682, %v652
          %v684 = vadd.f32 %v683, %v653
          %v685 = vadd.f32 %v684, %v654
          %v686 = vrot.slane %v685, 4
          %v687 = vadd.f32 %v685, %v686
          %v688 = vrot.slane %v687, 2
          %v689 = vadd.f32 %v687, %v688
          %v690 = vrot.slane %v689, 1
          %v691 = vadd.f32 %v689, %v690
          %v692 = vmul.f32 %v623, %v623
          %v693 = vmul.f32 %v624, %v624
          %v694 = vmul.f32 %v625, %v625
          %v695 = vmul.f32 %v626, %v626
          %v696 = vmul.f32 %v627, %v627
          %v697 = vmul.f32 %v628, %v628
          %v698 = vmul.f32 %v629, %v629
          %v699 = vmul.f32 %v630, %v630
          %v700 = vmul.f32 %v631, %v631
          %v701 = vmul.f32 %v632, %v632
          %v702 = vmul.f32 %v633, %v633
          %v703 = vmul.f32 %v634, %v634
          %v704 = vmul.f32 %v635, %v635
          %v705 = vmul.f32 %v636, %v636
          %v706 = vmul.f32 %v637, %v637
          %v707 = vmul.f32 %v638, %v638
          %v708 = vmul.f32 %v639, %v639
          %v709 = vmul.f32 %v640, %v640
          %v710 = vmul.f32 %v641, %v641
          %v711 = vmul.f32 %v642, %v642
          %v712 = vmul.f32 %v643, %v643
          %v713 = vmul.f32 %v644, %v644
          %v714 = vmul.f32 %v645, %v645
          %v715 = vmul.f32 %v646, %v646
          %v716 = vmul.f32 %v647, %v647
          %v717 = vmul.f32 %v648, %v648
          %v718 = vmul.f32 %v649, %v649
          %v719 = vmul.f32 %v650, %v650
          %v720 = vmul.f32 %v651, %v651
          %v721 = vmul.f32 %v652, %v652
          %v722 = vmul.f32 %v653, %v653
          %v723 = vmul.f32 %v654, %v654
          %v724 = vadd.f32 %v692, %v693
          %v725 = vadd.f32 %v724, %v694
          %v726 = vadd.f32 %v725, %v695
          %v727 = vadd.f32 %v726, %v696
          %v728 = vadd.f32 %v727, %v697
          %v729 = vadd.f32 %v728, %v698
          %v730 = vadd.f32 %v729, %v699
          %v731 = vadd.f32 %v730, %v700
          %v732 = vadd.f32 %v731, %v701
          %v733 = vadd.f32 %v732, %v702
          %v734 = vadd.f32 %v733, %v703
          %v735 = vadd.f32 %v734, %v704
          %v736 = vadd.f32 %v735, %v705
          %v737 = vadd.f32 %v736, %v706
          %v738 = vadd.f32 %v737, %v707
          %v739 = vadd.f32 %v738, %v708
          %v740 = vadd.f32 %v739, %v709
          %v741 = vadd.f32 %v740, %v710
          %v742 = vadd.f32 %v741, %v711
          %v743 = vadd.f32 %v742, %v712
          %v744 = vadd.f32 %v743, %v713
          %v745 = vadd.f32 %v744, %v714
          %v746 = vadd.f32 %v745, %v715
          %v747 = vadd.f32 %v746, %v716
          %v748 = vadd.f32 %v747, %v717
          %v749 = vadd.f32 %v748, %v718
          %v750 = vadd.f32 %v749, %v719
          %v751 = vadd.f32 %v750, %v720
          %v752 = vadd.f32 %v751, %v721
          %v753 = vadd.f32 %v752, %v722
          %v754 = vadd.f32 %v753, %v723
          %v755 = vrot.slane %v754, 4
          %v756 = vadd.f32 %v754, %v755
          %v757 = vrot.slane %v756, 2
          %v758 = vadd.f32 %v756, %v757
          %v759 = vrot.slane %v758, 1
          %v760 = vadd.f32 %v758, %v759
          %vm761 = vcmask 1040384
          %v762 = vsel %vm761, %v691, %v760
          %763 = vst [vmem:[%s212] sm:$0x3] %v762
        $region44: #{tpu_custom_call.1} parent=27 // pred_fallthru
          _
        %s764 = sand.u32 %s105, 1
        %s765 = scalar_lea.sflag [#allocation5], %s764
        %s766 = sand.u32 %s105, 1
        %s767 = smul.addr %s766, 2
        %s768 = scalar_lea.vmem [#allocation8], %s767
        // Predicated region
        $region45: #{tpu_custom_call.1} parent=27 // pred_check
          %p769 = pneg %p115
        $region46: #{tpu_custom_call.1} parent=27 // pred_check_branch
          %771 = sbr.rel (%p769) target = $region48
        $region47: #{tpu_custom_call.1} parent=27 // pred_region
          %s773 = ssub.s32 32, 32
          %774 = vsyncadd %s765, %s773
          %s775 = sadd.s32 %s26, %s25
          %s776 = smul.addr %s775, 32
          %s777 = scalar_lea.hbm %s2, %s776
          %s779 = sshll.u32 %s768, 4
          %s780 = int_to_ptr.vmem [resolvable:$true] %s779
          %782 = dma.vmem_to_hbm [thread:$0]  %s780, 32, %s777, %s765
        $region48: #{tpu_custom_call.1} parent=27 // pred_fallthru
          _
      $region28: #{tpu_custom_call.1} parent=5 // pred_fallthru
        _
      %p783 = scmp.le.s32.totalorder 2, %s15
      // Predicated region
      $region49: #{tpu_custom_call.1} parent=5 // pred_check
        %p784 = pneg %p783
      $region50: #{tpu_custom_call.1} parent=5 // pred_check_branch
        %786 = sbr.rel (%p784) target = $region52
      $region51: #{tpu_custom_call.1} parent=5 // pred_region
        %s787 = ssub.s32 %s15, 2
        // Predicated region
        $region53: #{tpu_custom_call.1} parent=51 // pred_check
          %p788 = pneg %p121
        $region54: #{tpu_custom_call.1} parent=51 // pred_check_branch
          %790 = sbr.rel (%p788) target = $region56
        $region55: #{tpu_custom_call.1} parent=51 // pred_region
          %s791 = sand.u32 %s106, 1
          %s792 = scalar_lea.sflag [#allocation5], %s791
          %s793 = sand.u32 %s106, 1
          %s794 = smul.addr %s793, 2
          %s795 = scalar_lea.vmem [#allocation8], %s794
          %796 = dma.done %s792, 32
        $region56: #{tpu_custom_call.1} parent=51 // pred_fallthru
          _
      $region52: #{tpu_custom_call.1} parent=5 // pred_fallthru
        _
    $region6: #{tpu_custom_call.1} parent=1 // loop_footer
      %s19 = sadd.s32 1, %s15
    $region7: #{tpu_custom_call.1} parent=1 // loop_footer_branch
      %14 = sbr.rel target = $region3
    $region8: #{tpu_custom_call.1} parent=1 // loop_exit
      _
    %797 = vsyncpa [#allocation4], 1
    %s798 = scalar_lea.sflag [#allocation4], 1
    %799 = vsyncpa %s798, 1
    %800 = vsyncpa [#allocation7], 1
    %801 = vsyncpa [#allocation5], 1
    %s802 = scalar_lea.sflag [#allocation5], 1
    %803 = vsyncpa %s802, 1

</llo_original>
